<compile_context>
chip_gen: v5e
topology: v5e:2x2
jax: 0.10.0
libtpu: 0.0.40
codegen_flags: <defaults>
</compile_context>

<pallas_src>
import jax
import jax.numpy as jnp
from jax import lax
from jax.experimental import pallas as pl
from jax.experimental.pallas import tpu as pltpu


def _round_up(x, m):
    return ((x + m - 1) // m) * m


# ---------------------------------------------------------------------------
# Kernel 1: Correlation (kernel_size=1, pad=max_disp, stride1=stride2=s)
# corr[(dy,dx), y, x] = (1/C) * sum_c f1[c,y*s,x*s] * f2[c,y*s+dy*s,x*s+dx*s]
# Grid = (image, dy).  The C-reduction runs on the MXU (bf16 operands, f32
# accumulate); the width-D band is extracted with one one-hot masked
# lane-reduce per dx (masks built in-kernel, 1/C folded in).
# ---------------------------------------------------------------------------
def _make_corr_kernel(D, Ho, Wo, Hp, Wp, C):
    inv_c = 1.0 / float(C)

    def kernel(g1_ref, g2_ref, o_ref):
        dy = pl.program_id(1)
        g1 = g1_ref[...]                                  # (Ho, Wo, C) bf16
        # dy shift: dynamic slice along the untiled leading axis only.
        g2d = g2_ref[pl.ds(dy, Ho), :, :]                 # (Ho, Wp, C) bf16
        # scores[y, x, v] = sum_c g1[y, x, c] * g2d[y, v, c]        (MXU)
        scores = lax.dot_general(
            g1, g2d,
            dimension_numbers=(((2,), (2,)), ((0,), (0,))),
            preferred_element_type=jnp.float32)           # (Ho, Wo, Wp) f32
        # one-hot band masks built in-kernel (1/C folded in)
        x_i = lax.broadcasted_iota(jnp.int32, (Wo, Wp), 0)
        v_i = lax.broadcasted_iota(jnp.int32, (Wo, Wp), 1)
        for dx in range(D):
            m = jnp.where(v_i == x_i + dx, inv_c, 0.0)    # (Wo, Wp) f32
            # out[dx, y, x] = scores[y, x, x + dx] / C
            o_ref[dx] = jnp.sum(scores * m[None, :, :], axis=-1)

    return kernel


def correlation(f1, f2, max_disp, stride):
    """f1, f2: (N, C, H, W) -> (N, D*D, Ho, Wo), D = 2*(max_disp//stride)+1."""
    N, C, H, W = f1.shape
    r = max_disp // stride
    D = 2 * r + 1
    # stride-grid subsample, channels last (lane dim = C), bf16 halves the
    # HBM->VMEM traffic and keeps the contraction on the native bf16 MXU.
    g1 = jnp.transpose(f1[:, :, ::stride, ::stride],
                       (0, 2, 3, 1)).astype(jnp.bfloat16)       # (N, Ho, Wo, C)
    g2 = jnp.transpose(f2[:, :, ::stride, ::stride],
                       (0, 2, 3, 1)).astype(jnp.bfloat16)
    Ho, Wo = g1.shape[1], g1.shape[2]
    g2 = jnp.pad(g2, ((0, 0), (r, r), (r, r), (0, 0)))          # (N, Hp, Wp, C)
    Hp, Wp = Ho + 2 * r, Wo + 2 * r

    out = pl.pallas_call(
        _make_corr_kernel(D, Ho, Wo, Hp, Wp, C),
        out_shape=jax.ShapeDtypeStruct((N, D, D, Ho, Wo), jnp.float32),
        grid=(N, D),
        in_specs=[
            pl.BlockSpec((None, Ho, Wo, C), lambda n, dy: (n, 0, 0, 0)),
            pl.BlockSpec((None, Hp, Wp, C), lambda n, dy: (n, 0, 0, 0)),
        ],
        out_specs=pl.BlockSpec((None, None, D, Ho, Wo),
                               lambda n, dy: (n, dy, 0, 0, 0)),
        compiler_params=pltpu.CompilerParams(
            dimension_semantics=("parallel", "parallel")),
    )(g1, g2)
    # rows are already ordered (dy, dx) -> flat index dy*D + dx
    return out.reshape(N, D * D, Ho, Wo)


def forward_corr(inputs, max_disp, stride):
    """inputs: (T, B, C, H, W); correlation of frame t against frame t-1."""
    T, B, C, H, W = inputs.shape
    if T <= 1:
        return inputs.reshape(-1, C, H, W)
    f1 = inputs[1:].reshape((T - 1) * B, C, H, W)     # frame t
    f2 = inputs[:-1].reshape((T - 1) * B, C, H, W)    # frame t-1
    return correlation(f1, f2, max_disp, stride)


# ---------------------------------------------------------------------------
# Kernel 2: corr_conv (3x3 s2 p1 conv + bias + ReLU) fused with conv_offset
# (1x1 conv, no bias).  Row-tiled, pipelined GEMM: bf16 operands / f32
# accumulate, resident single-buffered weights, 128-lane padded second matmul.
# ---------------------------------------------------------------------------
def _offset_kernel(p_ref, w1_ref, b1_ref, w2_ref, o_ref):
    h = jnp.dot(p_ref[...], w1_ref[...], preferred_element_type=jnp.float32)
    h = jnp.maximum(h + b1_ref[...], 0.0)
    o_ref[...] = jnp.dot(h.astype(jnp.bfloat16), w2_ref[...],
                         preferred_element_type=jnp.float32)


def offset_branch(corr_cat, w_corr, b_corr, w_off, kernel_size=3):
    """corr_cat: (N, Cc, Hc, Wc) -> offsets (N, Hout, Wout, G*kh*kw*2)."""
    N, Cc, Hc, Wc = corr_cat.shape
    Cout, _, kh, kw = w_corr.shape
    off_dim = w_off.shape[0]
    pad = (kernel_size - 1) // 2
    Hout = (Hc + 2 * pad - kh) // 2 + 1
    Wout = (Wc + 2 * pad - kw) // 2 + 1
    # im2col glue (channels-last, patch feature order (ki, kj, c)).
    # bf16 cast happens BEFORE the 9x patch expansion so the materialized
    # patches tensor (and its HBM re-read) is half-width.
    xcl = jnp.transpose(corr_cat, (0, 2, 3, 1)).astype(jnp.bfloat16)
    xp = jnp.pad(xcl, ((0, 0), (pad, pad), (pad, pad), (0, 0)))
    taps = [xp[:, i::2, j::2, :][:, :Hout, :Wout, :]
            for i in range(kh) for j in range(kw)]
    patches = jnp.stack(taps, axis=3).reshape(N * Hout * Wout, kh * kw * Cc)
    # TODO(synk): fold the 3x3/s2 gather into BlockSpec index maps so the
    # 9x-expanded patches matrix is never materialized in HBM.

    M, K1 = patches.shape
    tile_m = min(256, _round_up(M, 8))
    Mp = _round_up(M, tile_m)
    patches = jnp.pad(patches, ((0, Mp - M), (0, 0)))

    w1 = w_corr.transpose(2, 3, 1, 0).reshape(K1, Cout).astype(jnp.bfloat16)
    b1 = b_corr.reshape(1, Cout).astype(jnp.float32)
    n_pad = _round_up(off_dim, 128)                              # 72 -> 128
    w2 = jnp.pad(w_off.T, ((0, 0), (0, n_pad - off_dim))).astype(jnp.bfloat16)

    out = pl.pallas_call(
        _offset_kernel,
        out_shape=jax.ShapeDtypeStruct((Mp, n_pad), jnp.float32),
        grid=(Mp // tile_m,),
        in_specs=[
            pl.BlockSpec((tile_m, K1), lambda m: (m, 0)),
            # weights never change across the grid: single-buffer them so the
            # saved VMEM keeps tile_m=256 comfortable on v5e/v7x.
            pl.BlockSpec((K1, Cout), lambda m: (0, 0),
                         pipeline_mode=pl.Buffered(1)),
            pl.BlockSpec((1, Cout), lambda m: (0, 0),
                         pipeline_mode=pl.Buffered(1)),
            pl.BlockSpec((Cout, n_pad), lambda m: (0, 0),
                         pipeline_mode=pl.Buffered(1)),
        ],
        out_specs=pl.BlockSpec((tile_m, n_pad), lambda m: (m, 0)),
        compiler_params=pltpu.CompilerParams(
            dimension_semantics=("parallel",),
            vmem_limit_bytes=32 * 1024 * 1024),
    )(patches, w1, b1, w2)
    return out[:M, :off_dim].reshape(N, Hout, Wout, off_dim)


# ---------------------------------------------------------------------------
# Kernel 3: DeformConv (DCNv1) + ReLU.
# Grid = (image, Cout-tile, group*tap).  The bilinear coefficient matrix and
# the sampling matmul depend only on (image, tap), so the default Cout tile is
# the whole Cout (no redundant recompute); it only shrinks under a VMEM
# budget.  Tap-invariant output/source coordinates are hoisted into VMEM
# scratch (computed once per (image, Cout-tile) at the first tap).
# Accumulation in a f32 VMEM scratch, ReLU + store on the last tap.
# ---------------------------------------------------------------------------
def _make_deform_kernel(G, K, H, W, kw, pad):
    P = H * W
    S = P
    GK = G * K

    def kernel(x_ref, off_ref, w_ref, o_ref, acc_ref, pos_ref, src_ref):
        gk = pl.program_id(2)

        @pl.when(gk == 0)
        def _init():
            acc_ref[...] = jnp.zeros_like(acc_ref)
            # tap-invariant position math (integer div/mod is multi-op on the
            # VPU; compute it once instead of per tap).
            p_iota = lax.broadcasted_iota(jnp.int32, (1, P), 1)
            pos_ref[0:1, :] = (p_iota // W).astype(jnp.float32)
            pos_ref[1:2, :] = (p_iota % W).astype(jnp.float32)
            s_iota = lax.broadcasted_iota(jnp.int32, (S, 1), 0)
            src_ref[:, 0:1] = (s_iota // W).astype(jnp.float32)
            src_ref[:, 1:2] = (s_iota % W).astype(jnp.float32)

        k = gk % K
        ki = (k // kw).astype(jnp.float32)
        kj = (k % kw).astype(jnp.float32)
        py = pos_ref[0:1, :] + (ki - pad) + off_ref[0:1, :]      # (1, P)
        px = pos_ref[1:2, :] + (kj - pad) + off_ref[1:2, :]      # (1, P)
        src_y = src_ref[:, 0:1]                                   # (S, 1)
        src_x = src_ref[:, 1:2]
        # mmcv zero-padded bilinear rule as a dense (sources x positions) map.
        coef_t = (jnp.maximum(0.0, 1.0 - jnp.abs(py - src_y)) *
                  jnp.maximum(0.0, 1.0 - jnp.abs(px - src_x)))    # (S, P)
        # sampled_t[cg, p] = sum_s x[cg, s] * coef_t[s, p]         (MXU, bf16)
        sampled_t = jnp.dot(x_ref[...], coef_t.astype(jnp.bfloat16),
                            preferred_element_type=jnp.float32)   # (Cg, P)
        # acc[co, p] += sum_cg w[co, cg] * sampled_t[cg, p]        (MXU, bf16)
        acc_ref[...] += jnp.dot(w_ref[...], sampled_t.astype(jnp.bfloat16),
                                preferred_element_type=jnp.float32)

        @pl.when(gk == GK - 1)
        def _finalize():
            o_ref[...] = jnp.maximum(acc_ref[...], 0.0).astype(o_ref.dtype)

    return kernel


def deform_conv_relu(x, offsets_nhwc, weight, deform_groups, kernel_size=3,
                     vmem_budget_bytes=24 * 1024 * 1024):
    """x: (N, Cin, H, W); offsets_nhwc: (N, H, W, G*kh*kw*2);
    weight: (Cout, Cin, kh, kw).  Returns relu(deform_conv(x)) as NCHW."""
    N, Cin, H, W = x.shape
    Cout = weight.shape[0]
    kh = kw = kernel_size
    K = kh * kw
    G = deform_groups
    Cg = Cin // G
    pad = (kernel_size - 1) // 2
    P = H * W
    # Cout tile: prefer a single tile (sampling work is Cout-tile invariant);
    # shrink only when acc + double-buffered out/weight tiles exceed budget.
    # TODO(synk): on v7x with N == 1 a forced 2-way Cout split keeps both
    # TensorCores busy at the cost of redoing the sampling matmul once.
    co_tile = Cout
    while (co_tile > 128 and Cout % (co_tile // 2) == 0
           and co_tile * (3 * P * 4 + 2 * Cg * 2) > vmem_budget_bytes):
        co_tile //= 2
    assert Cout % co_tile == 0
    # group-wise features, channels on sublanes / positions on lanes    [glue]
    x_r = x.reshape(N, G, Cg, P).astype(jnp.bfloat16)
    # offsets lane-dense: channel layout (g*K + k)*2 + {0: dy, 1: dx}
    off = offsets_nhwc.reshape(N, P, G * K, 2).transpose(0, 2, 3, 1)
    off = off.astype(jnp.float32)                                # (N, G*K, 2, P)
    # weight tiles: (G*K, Cout, Cg)
    w_t = weight.reshape(Cout, G, Cg, K).transpose(1, 3, 0, 2).reshape(
        G * K, Cout, Cg).astype(jnp.bfloat16)

    out = pl.pallas_call(
        _make_deform_kernel(G, K, H, W, kw, pad),
        out_shape=jax.ShapeDtypeStruct((N, Cout, P), jnp.float32),
        grid=(N, Cout // co_tile, G * K),
        in_specs=[
            pl.BlockSpec((None, None, Cg, P),
                         lambda n, co, gk: (n, gk // K, 0, 0)),
            pl.BlockSpec((None, None, 2, P),
                         lambda n, co, gk: (n, gk, 0, 0)),
            pl.BlockSpec((None, co_tile, Cg),
                         lambda n, co, gk: (gk, co, 0)),
        ],
        out_specs=pl.BlockSpec((None, co_tile, P),
                               lambda n, co, gk: (n, co, 0)),
        scratch_shapes=[
            pltpu.VMEM((co_tile, P), jnp.float32),   # accumulator
            pltpu.VMEM((2, P), jnp.float32),         # output pixel coords
            pltpu.VMEM((P, 2), jnp.float32),         # source pixel coords
        ],
        compiler_params=pltpu.CompilerParams(
            dimension_semantics=("parallel", "parallel", "arbitrary"),
            vmem_limit_bytes=48 * 1024 * 1024),
    )(x_r, off, w_t)
    return out.reshape(N, Cout, H, W)


# ---------------------------------------------------------------------------
# CorrelationAdaptor.forward
# ---------------------------------------------------------------------------
def correlation_adaptor_forward(input_list, params, displacements, strides,
                                adapt_layer=3, deformable_groups=4,
                                kernel_size=3, is_train=False):
    T, B = input_list[0].shape[:2]
    outs = []
    for l in range(adapt_layer):
        x = input_list[l]
        outs.append(x.reshape((T * B,) + x.shape[2:]))
    feat_c5 = input_list[adapt_layer]
    if T > 1:
        corr_feats = [forward_corr(input_list[l], displacements[l], strides[l])
                      for l in range(len(displacements))]
        corr_cat = jnp.concatenate(corr_feats, axis=1)
        offsets = offset_branch(corr_cat, params["w_corr_conv"],
                                params["b_corr_conv"], params["w_conv_offset"],
                                kernel_size=kernel_size)
        feat_in = feat_c5[1:].reshape(((T - 1) * B,) + feat_c5.shape[2:])
        feat_adapt = deform_conv_relu(feat_in, offsets,
                                      params["w_conv_adaption"],
                                      deformable_groups,
                                      kernel_size=kernel_size)
        feat_adapt = jnp.concatenate([feat_c5[0], feat_adapt], axis=0)
    else:
        feat_adapt = feat_c5.reshape((B,) + feat_c5.shape[2:])
    outs.append(feat_adapt)
    if is_train:
        return outs, None
    return outs, dict(inputs=input_list)


def init_params(key, num_corr_channels, c5_channels, deformable_groups=4,
                kernel_size=3, bottleneck=256):
    """normal_init(std=0.01) for conv weights, zero biases (matches init_weights)."""
    k1, k2, k3 = jax.random.split(key, 3)
    offset_channels = kernel_size * kernel_size * 2            # non-modulated DCN
    return dict(
        w_corr_conv=0.01 * jax.random.normal(
            k1, (bottleneck, num_corr_channels, kernel_size, kernel_size),
            jnp.float32),
        b_corr_conv=jnp.zeros((bottleneck,), jnp.float32),
        # 1x1 conv weight stored as (out_ch, in_ch)
        w_conv_offset=0.01 * jax.random.normal(
            k2, (deformable_groups * offset_channels, bottleneck), jnp.float32),
        w_conv_adaption=0.01 * jax.random.normal(
            k3, (c5_channels, c5_channels, kernel_size, kernel_size),
            jnp.float32),
    )


if __name__ == "__main__":
    key = jax.random.PRNGKey(0)
    T, B = 2, 2
    in_channels = (8, 16, 32, 64)          # small stand-in for (256,512,1024,2048)
    spatials = (32, 16, 8, 4)              # FPN-style /2 pyramid
    displacements = (8, 4, 2)              # small stand-in for (32,16,8); same d/s
    strides = (4, 2, 1)
    deformable_groups = 4
    kernel_size = 3
    num_corr_channels = int(sum((2 * (d // s) + 1) ** 2
                                for d, s in zip(displacements, strides)))

    keys = jax.random.split(key, 5)
    input_list = [
        jax.random.normal(keys[l],
                          (T, B, in_channels[l], spatials[l], spatials[l]),
                          jnp.float32)
        for l in range(4)
    ]
    params = init_params(keys[4], num_corr_channels, in_channels[3],
                         deformable_groups, kernel_size)

    outs, out_dict = correlation_adaptor_forward(
        input_list, params, displacements, strides,
        adapt_layer=3, deformable_groups=deformable_groups,
        kernel_size=kernel_size, is_train=False)

    for o in outs:
        jax.block_until_ready(o)

    assert outs[0].shape == (T * B, in_channels[0], spatials[0], spatials[0])
    assert outs[1].shape == (T * B, in_channels[1], spatials[1], spatials[1])
    assert outs[2].shape == (T * B, in_channels[2], spatials[2], spatials[2])
    assert outs[3].shape == (T * B, in_channels[3], spatials[3], spatials[3])
    print("KERNEL_OK")
</pallas_src>

<mosaic_0001>
module attributes {stable_mosaic.version = 11 : i64} {
  func.func @kernel(%arg0: i32, %arg1: i32, %arg2: memref<1x8x8x8xbf16, #tpu.memory_space<vmem>>, %arg3: memref<1x12x12x8xbf16, #tpu.memory_space<vmem>>, %arg4: memref<1x1x5x8x8xf32, #tpu.memory_space<vmem>>) attributes {dimension_semantics = [#tpu.dimension_semantics<parallel>, #tpu.dimension_semantics<parallel>], iteration_bounds = array<i64: 2, 5>, scalar_prefetch = 0 : i64, scratch_operands = 0 : i64, tpu.core_type = #tpu.core_type<tc>, window_params = [{transform_indices = @transform_0, window_bounds = array<i64: 1, 8, 8, 8>}, {transform_indices = @transform_1, window_bounds = array<i64: 1, 12, 12, 8>}, {transform_indices = @transform_2, window_bounds = array<i64: 1, 1, 5, 8, 8>}]} {
    %c0 = arith.constant 0 : index
    %c0_0 = arith.constant 0 : index
    %c0_1 = arith.constant 0 : index
    %c0_2 = arith.constant 0 : index
    %0 = vector.load %arg2[%c0, %c0_0, %c0_1, %c0_2] : memref<1x8x8x8xbf16, #tpu.memory_space<vmem>>, vector<1x8x8x8xbf16>
    %1 = vector.shape_cast %0 : vector<1x8x8x8xbf16> to vector<8x8x8xbf16>
    %c0_3 = arith.constant 0 : index
    %2 = arith.index_cast %arg1 : i32 to index
    %c0_4 = arith.constant 0 : index
    %c0_5 = arith.constant 0 : index
    %3 = vector.load %arg3[%c0_3, %2, %c0_4, %c0_5] : memref<1x12x12x8xbf16, #tpu.memory_space<vmem>>, vector<1x8x12x8xbf16>
    %4 = vector.shape_cast %3 : vector<1x8x12x8xbf16> to vector<8x12x8xbf16>
    %cst = arith.constant dense<0.000000e+00> : vector<8x8x12xf32>
    %5 = tpu.matmul %1, %4, %cst {dimension_numbers = #tpu.dot_dimension_numbers<[2], [2], [1], [1], [0, 0, 0, 1, 1, 1], [0], [0]>} : vector<8x8x8xbf16>, vector<8x12x8xbf16>, vector<8x8x12xf32> -> vector<8x8x12xf32>
    %6 = tpu.iota {dimensions = array<i32: 0>} : vector<8x12xi32>
    %7 = tpu.iota {dimensions = array<i32: 1>} : vector<8x12xi32>
    %c0_i32 = arith.constant 0 : i32
    %8 = vector.broadcast %c0_i32 : i32 to vector<8x12xi32>
    %9 = arith.addi %6, %8 : vector<8x12xi32>
    %10 = arith.cmpi eq, %7, %9 : vector<8x12xi32>
    %cst_6 = arith.constant 1.250000e-01 : f32
    %cst_7 = arith.constant 0.000000e+00 : f32
    %11 = vector.broadcast %cst_6 : f32 to vector<8x12xf32>
    %12 = vector.broadcast %cst_7 : f32 to vector<8x12xf32>
    %13 = arith.select %10, %11, %12 : vector<8x12xi1>, vector<8x12xf32>
    %14 = vector.shape_cast %13 : vector<8x12xf32> to vector<1x8x12xf32>
    %15 = vector.broadcast %14 : vector<1x8x12xf32> to vector<8x8x12xf32>
    %16 = arith.mulf %5, %15 : vector<8x8x12xf32>
    %cst_8 = arith.constant dense<0.000000e+00> : vector<8x8xf32>
    %17 = vector.multi_reduction <add>, %16, %cst_8 [2] : vector<8x8x12xf32> to vector<8x8xf32>
    %c0_9 = arith.constant 0 : index
    %c0_10 = arith.constant 0 : index
    %c0_11 = arith.constant 0 : index
    %c0_12 = arith.constant 0 : index
    %c0_13 = arith.constant 0 : index
    %18 = vector.load %arg4[%c0_9, %c0_10, %c0_11, %c0_12, %c0_13] : memref<1x1x5x8x8xf32, #tpu.memory_space<vmem>>, vector<1x1x1x8x8xf32>
    %19 = vector.shape_cast %18 : vector<1x1x1x8x8xf32> to vector<8x8xf32>
    %20 = vector.shape_cast %17 : vector<8x8xf32> to vector<1x1x1x8x8xf32>
    tpu.vector_store %arg4[%c0_9, %c0_10, %c0_11, %c0_12, %c0_13], %20 {strides = array<i32>} : memref<1x1x5x8x8xf32, #tpu.memory_space<vmem>>, vector<1x1x1x8x8xf32>,
    %c1_i32 = arith.constant 1 : i32
    %21 = vector.broadcast %c1_i32 : i32 to vector<8x12xi32>
    %22 = arith.addi %6, %21 : vector<8x12xi32>
    %23 = arith.cmpi eq, %7, %22 : vector<8x12xi32>
    %cst_14 = arith.constant 1.250000e-01 : f32
    %cst_15 = arith.constant 0.000000e+00 : f32
    %24 = vector.broadcast %cst_14 : f32 to vector<8x12xf32>
    %25 = vector.broadcast %cst_15 : f32 to vector<8x12xf32>
    %26 = arith.select %23, %24, %25 : vector<8x12xi1>, vector<8x12xf32>
    %27 = vector.shape_cast %26 : vector<8x12xf32> to vector<1x8x12xf32>
    %28 = vector.broadcast %27 : vector<1x8x12xf32> to vector<8x8x12xf32>
    %29 = arith.mulf %5, %28 : vector<8x8x12xf32>
    %cst_16 = arith.constant dense<0.000000e+00> : vector<8x8xf32>
    %30 = vector.multi_reduction <add>, %29, %cst_16 [2] : vector<8x8x12xf32> to vector<8x8xf32>
    %c0_17 = arith.constant 0 : index
    %c0_18 = arith.constant 0 : index
    %c1 = arith.constant 1 : index
    %c0_19 = arith.constant 0 : index
    %c0_20 = arith.constant 0 : index
    %31 = vector.load %arg4[%c0_17, %c0_18, %c1, %c0_19, %c0_20] : memref<1x1x5x8x8xf32, #tpu.memory_space<vmem>>, vector<1x1x1x8x8xf32>
    %32 = vector.shape_cast %31 : vector<1x1x1x8x8xf32> to vector<8x8xf32>
    %33 = vector.shape_cast %30 : vector<8x8xf32> to vector<1x1x1x8x8xf32>
    tpu.vector_store %arg4[%c0_17, %c0_18, %c1, %c0_19, %c0_20], %33 {strides = array<i32>} : memref<1x1x5x8x8xf32, #tpu.memory_space<vmem>>, vector<1x1x1x8x8xf32>,
    %c2_i32 = arith.constant 2 : i32
    %34 = vector.broadcast %c2_i32 : i32 to vector<8x12xi32>
    %35 = arith.addi %6, %34 : vector<8x12xi32>
    %36 = arith.cmpi eq, %7, %35 : vector<8x12xi32>
    %cst_21 = arith.constant 1.250000e-01 : f32
    %cst_22 = arith.constant 0.000000e+00 : f32
    %37 = vector.broadcast %cst_21 : f32 to vector<8x12xf32>
    %38 = vector.broadcast %cst_22 : f32 to vector<8x12xf32>
    %39 = arith.select %36, %37, %38 : vector<8x12xi1>, vector<8x12xf32>
    %40 = vector.shape_cast %39 : vector<8x12xf32> to vector<1x8x12xf32>
    %41 = vector.broadcast %40 : vector<1x8x12xf32> to vector<8x8x12xf32>
    %42 = arith.mulf %5, %41 : vector<8x8x12xf32>
    %cst_23 = arith.constant dense<0.000000e+00> : vector<8x8xf32>
    %43 = vector.multi_reduction <add>, %42, %cst_23 [2] : vector<8x8x12xf32> to vector<8x8xf32>
    %c0_24 = arith.constant 0 : index
    %c0_25 = arith.constant 0 : index
    %c2 = arith.constant 2 : index
    %c0_26 = arith.constant 0 : index
    %c0_27 = arith.constant 0 : index
    %44 = vector.load %arg4[%c0_24, %c0_25, %c2, %c0_26, %c0_27] : memref<1x1x5x8x8xf32, #tpu.memory_space<vmem>>, vector<1x1x1x8x8xf32>
    %45 = vector.shape_cast %44 : vector<1x1x1x8x8xf32> to vector<8x8xf32>
    %46 = vector.shape_cast %43 : vector<8x8xf32> to vector<1x1x1x8x8xf32>
    tpu.vector_store %arg4[%c0_24, %c0_25, %c2, %c0_26, %c0_27], %46 {strides = array<i32>} : memref<1x1x5x8x8xf32, #tpu.memory_space<vmem>>, vector<1x1x1x8x8xf32>,
    %c3_i32 = arith.constant 3 : i32
    %47 = vector.broadcast %c3_i32 : i32 to vector<8x12xi32>
    %48 = arith.addi %6, %47 : vector<8x12xi32>
    %49 = arith.cmpi eq, %7, %48 : vector<8x12xi32>
    %cst_28 = arith.constant 1.250000e-01 : f32
    %cst_29 = arith.constant 0.000000e+00 : f32
    %50 = vector.broadcast %cst_28 : f32 to vector<8x12xf32>
    %51 = vector.broadcast %cst_29 : f32 to vector<8x12xf32>
    %52 = arith.select %49, %50, %51 : vector<8x12xi1>, vector<8x12xf32>
    %53 = vector.shape_cast %52 : vector<8x12xf32> to vector<1x8x12xf32>
    %54 = vector.broadcast %53 : vector<1x8x12xf32> to vector<8x8x12xf32>
    %55 = arith.mulf %5, %54 : vector<8x8x12xf32>
    %cst_30 = arith.constant dense<0.000000e+00> : vector<8x8xf32>
    %56 = vector.multi_reduction <add>, %55, %cst_30 [2] : vector<8x8x12xf32> to vector<8x8xf32>
    %c0_31 = arith.constant 0 : index
    %c0_32 = arith.constant 0 : index
    %c3 = arith.constant 3 : index
    %c0_33 = arith.constant 0 : index
    %c0_34 = arith.constant 0 : index
    %57 = vector.load %arg4[%c0_31, %c0_32, %c3, %c0_33, %c0_34] : memref<1x1x5x8x8xf32, #tpu.memory_space<vmem>>, vector<1x1x1x8x8xf32>
    %58 = vector.shape_cast %57 : vector<1x1x1x8x8xf32> to vector<8x8xf32>
    %59 = vector.shape_cast %56 : vector<8x8xf32> to vector<1x1x1x8x8xf32>
    tpu.vector_store %arg4[%c0_31, %c0_32, %c3, %c0_33, %c0_34], %59 {strides = array<i32>} : memref<1x1x5x8x8xf32, #tpu.memory_space<vmem>>, vector<1x1x1x8x8xf32>,
    %c4_i32 = arith.constant 4 : i32
    %60 = vector.broadcast %c4_i32 : i32 to vector<8x12xi32>
    %61 = arith.addi %6, %60 : vector<8x12xi32>
    %62 = arith.cmpi eq, %7, %61 : vector<8x12xi32>
    %cst_35 = arith.constant 1.250000e-01 : f32
    %cst_36 = arith.constant 0.000000e+00 : f32
    %63 = vector.broadcast %cst_35 : f32 to vector<8x12xf32>
    %64 = vector.broadcast %cst_36 : f32 to vector<8x12xf32>
    %65 = arith.select %62, %63, %64 : vector<8x12xi1>, vector<8x12xf32>
    %66 = vector.shape_cast %65 : vector<8x12xf32> to vector<1x8x12xf32>
    %67 = vector.broadcast %66 : vector<1x8x12xf32> to vector<8x8x12xf32>
    %68 = arith.mulf %5, %67 : vector<8x8x12xf32>
    %cst_37 = arith.constant dense<0.000000e+00> : vector<8x8xf32>
    %69 = vector.multi_reduction <add>, %68, %cst_37 [2] : vector<8x8x12xf32> to vector<8x8xf32>
    %c0_38 = arith.constant 0 : index
    %c0_39 = arith.constant 0 : index
    %c4 = arith.constant 4 : index
    %c0_40 = arith.constant 0 : index
    %c0_41 = arith.constant 0 : index
    %70 = vector.load %arg4[%c0_38, %c0_39, %c4, %c0_40, %c0_41] : memref<1x1x5x8x8xf32, #tpu.memory_space<vmem>>, vector<1x1x1x8x8xf32>
    %71 = vector.shape_cast %70 : vector<1x1x1x8x8xf32> to vector<8x8xf32>
    %72 = vector.shape_cast %69 : vector<8x8xf32> to vector<1x1x1x8x8xf32>
    tpu.vector_store %arg4[%c0_38, %c0_39, %c4, %c0_40, %c0_41], %72 {strides = array<i32>} : memref<1x1x5x8x8xf32, #tpu.memory_space<vmem>>, vector<1x1x1x8x8xf32>,
    return
  }
  func.func @transform_0(%arg0: i32, %arg1: i32) -> (i32, i32, i32, i32) {
    %c0_i32 = arith.constant 0 : i32
    %c0_i32_0 = arith.constant 0 : i32
    %c0_i32_1 = arith.constant 0 : i32
    %c0_i32_2 = arith.constant 0 : i32
    return %arg0, %c0_i32, %c0_i32_0, %c0_i32_1 : i32, i32, i32, i32
  }
  func.func @transform_1(%arg0: i32, %arg1: i32) -> (i32, i32, i32, i32) {
    %c0_i32 = arith.constant 0 : i32
    %c0_i32_0 = arith.constant 0 : i32
    %c0_i32_1 = arith.constant 0 : i32
    %c0_i32_2 = arith.constant 0 : i32
    return %arg0, %c0_i32, %c0_i32_0, %c0_i32_1 : i32, i32, i32, i32
  }
  func.func @transform_2(%arg0: i32, %arg1: i32) -> (i32, i32, i32, i32, i32) {
    %c0_i32 = arith.constant 0 : i32
    %c0_i32_0 = arith.constant 0 : i32
    %c0_i32_1 = arith.constant 0 : i32
    %c0_i32_2 = arith.constant 0 : i32
    return %arg0, %arg1, %c0_i32, %c0_i32_0, %c0_i32_1 : i32, i32, i32, i32, i32
  }
}

</mosaic_0001>

<llo_original>
// kernel: tpu_custom_call.1
$region0: #{tpu_custom_call.1}
  #allocation0 [shape = 'u32[]', space=smem, size = 0x4, offset = 0x4, fixed_abs, tag = 'smem constant byte address 0x4 - core index']
  #allocation1 [shape = 'u32[72,128]{1,0:T(1,128)}', space=vmem, size = 0x9000, scoped, tag = 'internal scratch']
  %s0 = inlined_call_operand.vmem [shape: bf16[2,8,8,8], index: 0, kind: input, shape index: {}]
  %s1 = inlined_call_operand.vmem [shape: bf16[2,12,12,8], index: 1, kind: input, shape index: {}]
  %s2 = inlined_call_operand.hbm [shape: f32[2,5,5,8,8], index: 2, kind: output, shape index: {}]
  %s3 = sld [smem:[#allocation0]]
  $region41: #{tpu_custom_call.1} parent=0
    _
  %s5 = ssub.s32 1, %s3
  %s6 = scalar_select 0, %s5, %s3
  $region1: #{tpu_custom_call.1} parent=0
    #allocation2 [shape = 'u8[40960]{0}', space=vmem, size = 0xa000, scoped, tag = 'output window, operand 0']
    #allocation3 [shape = 's32[2]{0}', space=sflag, size = 0x8, scoped, tag = 'scoped memory for tpu_custom_call.1']
    %7 = vsyncpa [#allocation3], 0
    %s8 = scalar_lea.sflag [#allocation3], 1
    %9 = vsyncpa %s8, 0
    loop: start=0, step=1, limit=12
    $region2: #{tpu_custom_call.1} parent=1 // loop_pre_header
      _
    $region3: #{tpu_custom_call.1} parent=1 // loop_header
      %s11 = sphi 0, %s15
      %p12 = scmp.ge.s32.totalorder %s11, 12
      %s18 = sphi 0, %s30
      %s19 = sphi 0, %s26
      %s20 = sphi 0, %s18
      %s21 = sphi 0, %s19
      %s22 = sphi 0, %s20
      %s23 = sphi 0, %s21
      %s33 = sphi 0, %s35
      %s36 = sphi 0, %s33
      %s37 = sphi 0, %s36
      %s53 = sphi 0, %s37
      %s59 = sphi 0, %s61
      %s62 = sphi 0, %s59
      %s63 = sphi 0, %s62
      %s79 = sphi 0, %s63
      %s87 = sphi 0, %s89
      %s90 = sphi 0, %s87
      %s91 = sphi 0, %s90
      %s107 = sphi 0, %s91
    $region4: #{tpu_custom_call.1} parent=1 // loop_header_branch
      %14 = sbr.rel (%p12) target = $region8
    $region5: #{tpu_custom_call.1} parent=1 // loop_body
      %s16 = ssub.s32 %s11, 1
      %s17 = ssub.s32 %s11, 2
      %s24 = sadd.s32 1, %s19
      %p25 = scmp.ge.s32.totalorder %s24, 5
      %s26 = scalar_select %p25, 0, %s24
      %s27 = sadd.s32 1, %s18
      %s28 = scalar_select %p25, %s27, %s18
      %p29 = scmp.ge.s32.totalorder %s28, 2
      %s30 = scalar_select %p29, 0, %s28
      %s31 = ssub.s32 %s18, %s30
      %p32 = scmp.eq.s32.totalorder %s31, 0
      %s34 = sadd.s32 %s33, 1
      %s35 = scalar_select %p32, %s33, %s34
      %p38 = pneg %p32
      %p39 = scmp.eq.s32.totalorder %s11, 9
      %p40 = por %p38, %p39
      %p41 = scmp.ne.s32.totalorder %s33, %s36
      %p42 = scmp.eq.s32.totalorder %s11, 0
      %p43 = por %p41, %p42
      %p44 = scmp.ne.s32.totalorder %s33, %s36
      %p45 = scmp.eq.s32.totalorder %s16, 9
      %p46 = por %p44, %p45
      %p47 = scmp.ne.s32.totalorder %s36, %s37
      %p48 = scmp.eq.s32.totalorder %s16, 0
      %p49 = por %p47, %p48
      %p50 = scmp.ne.s32.totalorder %s36, %s37
      %p51 = scmp.eq.s32.totalorder %s17, 9
      %p52 = por %p50, %p51
      %p54 = scmp.ne.s32.totalorder %s37, %s53
      %p55 = scmp.eq.s32.totalorder %s17, 0
      %p56 = por %p54, %p55
      %s57 = ssub.s32 %s18, %s30
      %p58 = scmp.eq.s32.totalorder %s57, 0
      %s60 = sadd.s32 %s59, 1
      %s61 = scalar_select %p58, %s59, %s60
      %p64 = pneg %p58
      %p65 = scmp.eq.s32.totalorder %s11, 9
      %p66 = por %p64, %p65
      %p67 = scmp.ne.s32.totalorder %s59, %s62
      %p68 = scmp.eq.s32.totalorder %s11, 0
      %p69 = por %p67, %p68
      %p70 = scmp.ne.s32.totalorder %s59, %s62
      %p71 = scmp.eq.s32.totalorder %s16, 9
      %p72 = por %p70, %p71
      %p73 = scmp.ne.s32.totalorder %s62, %s63
      %p74 = scmp.eq.s32.totalorder %s16, 0
      %p75 = por %p73, %p74
      %p76 = scmp.ne.s32.totalorder %s62, %s63
      %p77 = scmp.eq.s32.totalorder %s17, 9
      %p78 = por %p76, %p77
      %p80 = scmp.ne.s32.totalorder %s63, %s79
      %p81 = scmp.eq.s32.totalorder %s17, 0
      %p82 = por %p80, %p81
      %s83 = ssub.s32 %s18, %s30
      %s84 = ssub.s32 %s19, %s26
      %s85 = sor.u32 %s83, %s84
      %p86 = scmp.eq.s32.totalorder %s85, 0
      %s88 = sadd.s32 %s87, 1
      %s89 = scalar_select %p86, %s87, %s88
      %p92 = pneg %p86
      %p93 = scmp.eq.s32.totalorder %s11, 9
      %p94 = por %p92, %p93
      %p95 = scmp.ne.s32.totalorder %s87, %s90
      %p96 = scmp.eq.s32.totalorder %s11, 0
      %p97 = por %p95, %p96
      %p98 = scmp.ne.s32.totalorder %s87, %s90
      %p99 = scmp.eq.s32.totalorder %s16, 9
      %p100 = por %p98, %p99
      %p101 = scmp.ne.s32.totalorder %s90, %s91
      %p102 = scmp.eq.s32.totalorder %s16, 0
      %p103 = por %p101, %p102
      %p104 = scmp.ne.s32.totalorder %s90, %s91
      %p105 = scmp.eq.s32.totalorder %s17, 9
      %p106 = por %p104, %p105
      %p108 = scmp.ne.s32.totalorder %s91, %s107
      %p109 = scmp.eq.s32.totalorder %s17, 0
      %p110 = por %p108, %p109
      %p111 = scmp.le.s32.totalorder 1, %s11
      %p112 = scmp.lt.s32.totalorder %s11, 11
      %p113 = pnand %p111, %p112
      %p114 = pneg %p113
      // Predicated region
      $region9: #{tpu_custom_call.1} parent=5 // pred_check
        _
      $region10: #{tpu_custom_call.1} parent=5 // pred_check_branch
        %116 = sbr.rel (%p113) target = $region12
      $region11: #{tpu_custom_call.1} parent=5 // pred_region
        %s117 = ssub.s32 %s11, 1
      $region12: #{tpu_custom_call.1} parent=5 // pred_fallthru
        _
      %p118 = scmp.lt.s32.totalorder %s11, 10
      // Predicated region
      $region13: #{tpu_custom_call.1} parent=5 // pred_check
        %p119 = pneg %p118
      $region14: #{tpu_custom_call.1} parent=5 // pred_check_branch
        %121 = sbr.rel (%p119) target = $region16
      $region15: #{tpu_custom_call.1} parent=5 // pred_region
        // Predicated region
        $region17: #{tpu_custom_call.1} parent=15 // pred_check
          %p122 = pneg %p43
        $region18: #{tpu_custom_call.1} parent=15 // pred_check_branch
          %124 = sbr.rel (%p122) target = $region20
        $region19: #{tpu_custom_call.1} parent=15 // pred_region
          %p125 = scmp.lt.s32.totalorder %s18, 1
          %s126 = scalar_select %p125, %s18, 1
          %s127 = smul.addr %s126, 8
          %s128 = smul.addr %s127, 4
          %s129 = scalar_lea.vmem %s0, %s128
        $region20: #{tpu_custom_call.1} parent=15 // pred_fallthru
          _
        // Predicated region
        $region21: #{tpu_custom_call.1} parent=15 // pred_check
          %p130 = pneg %p69
        $region22: #{tpu_custom_call.1} parent=15 // pred_check_branch
          %132 = sbr.rel (%p130) target = $region24
        $region23: #{tpu_custom_call.1} parent=15 // pred_region
          %p133 = scmp.lt.s32.totalorder %s18, 1
          %s134 = scalar_select %p133, %s18, 1
          %s135 = smul.addr %s134, 24
          %s136 = smul.addr %s135, 4
          %s137 = scalar_lea.vmem %s1, %s136
        $region24: #{tpu_custom_call.1} parent=15 // pred_fallthru
          _
      $region16: #{tpu_custom_call.1} parent=5 // pred_fallthru
        _
      %p138 = scmp.le.s32.totalorder 1, %s11
      %p139 = scmp.lt.s32.totalorder %s11, 11
      %p140 = pnand %p138, %p139
      %p141 = pneg %p140
      // Predicated region
      $region25: #{tpu_custom_call.1} parent=5 // pred_check
        _
      $region26: #{tpu_custom_call.1} parent=5 // pred_check_branch
        %143 = sbr.rel (%p140) target = $region28
      $region27: #{tpu_custom_call.1} parent=5 // pred_region
        %s144 = ssub.s32 %s11, 1
        %p145 = scmp.lt.s32.totalorder %s20, 1
        %s146 = scalar_select %p145, %s20, 1
        %s147 = smul.addr %s146, 8
        %s148 = smul.addr %s147, 4
        %s149 = scalar_lea.vmem %s0, %s148
        %p150 = pneg %p49
        %p151 = pneg %p46
        %p152 = scmp.lt.s32.totalorder %s20, 1
        %s153 = scalar_select %p152, %s20, 1
        %s154 = smul.addr %s153, 24
        %s155 = smul.addr %s154, 4
        %s156 = scalar_lea.vmem %s1, %s155
        %p157 = pneg %p75
        %p158 = pneg %p72
        %p159 = pneg %p103
        %p160 = pneg %p100
        %s161 = sand.u32 %s90, 1
        %s162 = scalar_lea.sflag [#allocation3], %s161
        %s163 = sand.u32 %s90, 1
        %s164 = smul.addr %s163, 40
        %s165 = scalar_lea.vmem [#allocation2], %s164
        %p166 = scmp.lt.s32.totalorder %s20, 1
        %s167 = scalar_select %p166, %s20, 1
        %s168 = smul.addr %s167, 8
        %s169 = smul.addr %s168, 4
        %s170 = scalar_lea.vmem %s0, %s169
        %p171 = scmp.lt.s32.totalorder %s20, 1
        %s172 = scalar_select %p171, %s20, 1
        %s173 = smul.addr %s172, 24
        %s174 = smul.addr %s173, 4
        %s175 = scalar_lea.vmem %s1, %s174
        %v177 = vld [vmem:[%s170] sm:$0xf]
        %v178 = vld [vmem:[%s170 + $0x4] sm:$0xf]
        %v179 = vld [vmem:[%s170 + $0x8] sm:$0xf]
        %v180 = vld [vmem:[%s170 + $0xc] sm:$0xf]
        %v181 = vld [vmem:[%s170 + $0x10] sm:$0xf]
        %v182 = vld [vmem:[%s170 + $0x14] sm:$0xf]
        %v183 = vld [vmem:[%s170 + $0x18] sm:$0xf]
        %v184 = vld [vmem:[%s170 + $0x1c] sm:$0xf]
        %s185 = smul.u32 %s21, 2
        %s186 = smul.addr %s185, 4
        %s187 = scalar_lea.vmem %s175, %s186
        %v188 = vld [vmem:[%s187] sm:$0xf]
        %v189 = vld [vmem:[%s187 + $0x4] sm:$0x3]
        %v190 = vld [vmem:[%s187 + $0x8] sm:$0xf]
        %v191 = vld [vmem:[%s187 + $0xc] sm:$0x3]
        %v192 = vld [vmem:[%s187 + $0x10] sm:$0xf]
        %v193 = vld [vmem:[%s187 + $0x14] sm:$0x3]
        %v194 = vld [vmem:[%s187 + $0x18] sm:$0xf]
        %v195 = vld [vmem:[%s187 + $0x1c] sm:$0x3]
        %v196 = vld [vmem:[%s187 + $0x20] sm:$0xf]
        %v197 = vld [vmem:[%s187 + $0x24] sm:$0x3]
        %v198 = vld [vmem:[%s187 + $0x28] sm:$0xf]
        %v199 = vld [vmem:[%s187 + $0x2c] sm:$0x3]
        %v200 = vld [vmem:[%s187 + $0x30] sm:$0xf]
        %v201 = vld [vmem:[%s187 + $0x34] sm:$0x3]
        %v202 = vld [vmem:[%s187 + $0x38] sm:$0xf]
        %v203 = vld [vmem:[%s187 + $0x3c] sm:$0x3]
        %v206 = vunpack.c.l.b16 %v188
        %v207 = vunpack.c.l.b16 %v189
        %v208 = vpack.c.b16 %v207, %v206
        %vm209 = vcmask 64512
        %v211 = vsel %vm209, %v177, 0
        %v214 = vsel %vm209, %v208, 0
        %216 = vmatpush.bf16.xpose.msra.mxu0 0
        %217 = vmatpush.bf16.xpose.msra.mxu0 0
        %218 = vmatpush.bf16.xpose.msra.mxu0 0
        %219 = vmatpush.bf16.xpose.msra.mxu0 0
        %220 = vmatpush.bf16.xpose.msra.mxu0 0
        %221 = vmatpush.bf16.xpose.msra.mxu0 0
        %222 = vmatpush.bf16.xpose.msra.mxu0 0
        %223 = vmatpush.bf16.xpose.msra.mxu0 %v214
        %224 = vmatmul.bf16.gmra.mxu0 %v211
        %v225 = vpop.f32.mrf.mxu0
        %v226 = vadd.f32 0.0, %v225
        %v227 = vpop.f32.mrf.mxu0
        %228 = vdwg.mxu0
        %v231 = vunpack.c.l.b16 %v190
        %v232 = vunpack.c.l.b16 %v191
        %v233 = vpack.c.b16 %v232, %v231
        %v235 = vsel %vm209, %v178, 0
        %v238 = vsel %vm209, %v233, 0
        %240 = vmatpush.bf16.xpose.msra.mxu0 0
        %241 = vmatpush.bf16.xpose.msra.mxu0 0
        %242 = vmatpush.bf16.xpose.msra.mxu0 0
        %243 = vmatpush.bf16.xpose.msra.mxu0 0
        %244 = vmatpush.bf16.xpose.msra.mxu0 0
        %245 = vmatpush.bf16.xpose.msra.mxu0 0
        %246 = vmatpush.bf16.xpose.msra.mxu0 0
        %247 = vmatpush.bf16.xpose.msra.mxu0 %v238
        %248 = vmatmul.bf16.gmra.mxu0 %v235
        %v249 = vpop.f32.mrf.mxu0
        %v250 = vadd.f32 0.0, %v249
        %v251 = vpop.f32.mrf.mxu0
        %252 = vdwg.mxu0
        %v255 = vunpack.c.l.b16 %v192
        %v256 = vunpack.c.l.b16 %v193
        %v257 = vpack.c.b16 %v256, %v255
        %v259 = vsel %vm209, %v179, 0
        %v262 = vsel %vm209, %v257, 0
        %264 = vmatpush.bf16.xpose.msra.mxu0 0
        %265 = vmatpush.bf16.xpose.msra.mxu0 0
        %266 = vmatpush.bf16.xpose.msra.mxu0 0
        %267 = vmatpush.bf16.xpose.msra.mxu0 0
        %268 = vmatpush.bf16.xpose.msra.mxu0 0
        %269 = vmatpush.bf16.xpose.msra.mxu0 0
        %270 = vmatpush.bf16.xpose.msra.mxu0 0
        %271 = vmatpush.bf16.xpose.msra.mxu0 %v262
        %272 = vmatmul.bf16.gmra.mxu0 %v259
        %v273 = vpop.f32.mrf.mxu0
        %v274 = vadd.f32 0.0, %v273
        %v275 = vpop.f32.mrf.mxu0
        %276 = vdwg.mxu0
        %v279 = vunpack.c.l.b16 %v194
        %v280 = vunpack.c.l.b16 %v195
        %v281 = vpack.c.b16 %v280, %v279
        %v283 = vsel %vm209, %v180, 0
        %v286 = vsel %vm209, %v281, 0
        %288 = vmatpush.bf16.xpose.msra.mxu0 0
        %289 = vmatpush.bf16.xpose.msra.mxu0 0
        %290 = vmatpush.bf16.xpose.msra.mxu0 0
        %291 = vmatpush.bf16.xpose.msra.mxu0 0
        %292 = vmatpush.bf16.xpose.msra.mxu0 0
        %293 = vmatpush.bf16.xpose.msra.mxu0 0
        %294 = vmatpush.bf16.xpose.msra.mxu0 0
        %295 = vmatpush.bf16.xpose.msra.mxu0 %v286
        %296 = vmatmul.bf16.gmra.mxu0 %v283
        %v297 = vpop.f32.mrf.mxu0
        %v298 = vadd.f32 0.0, %v297
        %v299 = vpop.f32.mrf.mxu0
        %300 = vdwg.mxu0
        %v303 = vunpack.c.l.b16 %v196
        %v304 = vunpack.c.l.b16 %v197
        %v305 = vpack.c.b16 %v304, %v303
        %v307 = vsel %vm209, %v181, 0
        %v310 = vsel %vm209, %v305, 0
        %312 = vmatpush.bf16.xpose.msra.mxu0 0
        %313 = vmatpush.bf16.xpose.msra.mxu0 0
        %314 = vmatpush.bf16.xpose.msra.mxu0 0
        %315 = vmatpush.bf16.xpose.msra.mxu0 0
        %316 = vmatpush.bf16.xpose.msra.mxu0 0
        %317 = vmatpush.bf16.xpose.msra.mxu0 0
        %318 = vmatpush.bf16.xpose.msra.mxu0 0
        %319 = vmatpush.bf16.xpose.msra.mxu0 %v310
        %320 = vmatmul.bf16.gmra.mxu0 %v307
        %v321 = vpop.f32.mrf.mxu0
        %v322 = vadd.f32 0.0, %v321
        %v323 = vpop.f32.mrf.mxu0
        %324 = vdwg.mxu0
        %v327 = vunpack.c.l.b16 %v198
        %v328 = vunpack.c.l.b16 %v199
        %v329 = vpack.c.b16 %v328, %v327
        %v331 = vsel %vm209, %v182, 0
        %v334 = vsel %vm209, %v329, 0
        %336 = vmatpush.bf16.xpose.msra.mxu0 0
        %337 = vmatpush.bf16.xpose.msra.mxu0 0
        %338 = vmatpush.bf16.xpose.msra.mxu0 0
        %339 = vmatpush.bf16.xpose.msra.mxu0 0
        %340 = vmatpush.bf16.xpose.msra.mxu0 0
        %341 = vmatpush.bf16.xpose.msra.mxu0 0
        %342 = vmatpush.bf16.xpose.msra.mxu0 0
        %343 = vmatpush.bf16.xpose.msra.mxu0 %v334
        %344 = vmatmul.bf16.gmra.mxu0 %v331
        %v345 = vpop.f32.mrf.mxu0
        %v346 = vadd.f32 0.0, %v345
        %v347 = vpop.f32.mrf.mxu0
        %348 = vdwg.mxu0
        %v351 = vunpack.c.l.b16 %v200
        %v352 = vunpack.c.l.b16 %v201
        %v353 = vpack.c.b16 %v352, %v351
        %v355 = vsel %vm209, %v183, 0
        %v358 = vsel %vm209, %v353, 0
        %360 = vmatpush.bf16.xpose.msra.mxu0 0
        %361 = vmatpush.bf16.xpose.msra.mxu0 0
        %362 = vmatpush.bf16.xpose.msra.mxu0 0
        %363 = vmatpush.bf16.xpose.msra.mxu0 0
        %364 = vmatpush.bf16.xpose.msra.mxu0 0
        %365 = vmatpush.bf16.xpose.msra.mxu0 0
        %366 = vmatpush.bf16.xpose.msra.mxu0 0
        %367 = vmatpush.bf16.xpose.msra.mxu0 %v358
        %368 = vmatmul.bf16.gmra.mxu0 %v355
        %v369 = vpop.f32.mrf.mxu0
        %v370 = vadd.f32 0.0, %v369
        %v371 = vpop.f32.mrf.mxu0
        %372 = vdwg.mxu0
        %v375 = vunpack.c.l.b16 %v202
        %v376 = vunpack.c.l.b16 %v203
        %v377 = vpack.c.b16 %v376, %v375
        %v379 = vsel %vm209, %v184, 0
        %v382 = vsel %vm209, %v377, 0
        %384 = vmatpush.bf16.xpose.msra.mxu0 0
        %385 = vmatpush.bf16.xpose.msra.mxu0 0
        %386 = vmatpush.bf16.xpose.msra.mxu0 0
        %387 = vmatpush.bf16.xpose.msra.mxu0 0
        %388 = vmatpush.bf16.xpose.msra.mxu0 0
        %389 = vmatpush.bf16.xpose.msra.mxu0 0
        %390 = vmatpush.bf16.xpose.msra.mxu0 0
        %391 = vmatpush.bf16.xpose.msra.mxu0 %v382
        %392 = vmatmul.bf16.gmra.mxu0 %v379
        %v393 = vpop.f32.mrf.mxu0
        %v394 = vadd.f32 0.0, %v393
        %v395 = vpop.f32.mrf.mxu0
        %396 = vdwg.mxu0
        %v397 = vlaneseq
        %v398 = vshrl.u32 %v397, 7
        %v399 = vlaneseq
        %v400 = vand.u32 %v399, 127
        %vm401 = vcmp.eq.s32.totalorder %v400, %v398
        %v402 = vsel %vm401, 0.125, 0.0
        %v403 = vmul.f32 %v226, %v402
        %v404 = vmul.f32 %v250, %v402
        %v405 = vmul.f32 %v274, %v402
        %v406 = vmul.f32 %v298, %v402
        %v407 = vmul.f32 %v322, %v402
        %v408 = vmul.f32 %v346, %v402
        %v409 = vmul.f32 %v370, %v402
        %v410 = vmul.f32 %v394, %v402
        %vm411 = vcmask 97280
        %v412 = vsel %vm411, %v403, 0.0
        %413 = vadd.xlane.f32.xlu0 %v412
        %v414 = vpop.xlane.xlu0 %413
        %v415 = vsel %vm411, %v404, 0.0
        %416 = vadd.xlane.f32.xlu0 %v415
        %v417 = vpop.xlane.xlu0 %416
        %v418 = vsel %vm411, %v405, 0.0
        %419 = vadd.xlane.f32.xlu0 %v418
        %v420 = vpop.xlane.xlu0 %419
        %v421 = vsel %vm411, %v406, 0.0
        %422 = vadd.xlane.f32.xlu0 %v421
        %v423 = vpop.xlane.xlu0 %422
        %v424 = vsel %vm411, %v407, 0.0
        %425 = vadd.xlane.f32.xlu0 %v424
        %v426 = vpop.xlane.xlu0 %425
        %v427 = vsel %vm411, %v408, 0.0
        %428 = vadd.xlane.f32.xlu0 %v427
        %v429 = vpop.xlane.xlu0 %428
        %v430 = vsel %vm411, %v409, 0.0
        %431 = vadd.xlane.f32.xlu0 %v430
        %v432 = vpop.xlane.xlu0 %431
        %v433 = vsel %vm411, %v410, 0.0
        %434 = vadd.xlane.f32.xlu0 %v433
        %v435 = vpop.xlane.xlu0 %434
        %v444 = vperm.slane %v414, %v400
        %v445 = vperm.slane %v417, %v400
        %v446 = vperm.slane %v420, %v400
        %v447 = vperm.slane %v423, %v400
        %v448 = vperm.slane %v426, %v400
        %v449 = vperm.slane %v429, %v400
        %v450 = vperm.slane %v432, %v400
        %v451 = vperm.slane %v435, %v400
        %vm452 = vcmask 1041409
        %v453 = vsel %vm452, %v445, %v444
        %vm454 = vcmask 1042434
        %v455 = vsel %vm454, %v446, %v453
        %vm456 = vcmask 1043459
        %v457 = vsel %vm456, %v447, %v455
        %vm458 = vcmask 1044484
        %v459 = vsel %vm458, %v448, %v457
        %vm460 = vcmask 1045509
        %v461 = vsel %vm460, %v449, %v459
        %vm462 = vcmask 1046534
        %v463 = vsel %vm462, %v450, %v461
        %vm464 = vcmask 1047559
        %v465 = vsel %vm464, %v451, %v463
        %467 = vst.msk [vmem:[%s165] sm:$0xff] %vm209, %v465
        %v468 = vadd.s32 %v398, 1
        %vm469 = vcmp.eq.s32.totalorder %v400, %v468
        %v470 = vsel %vm469, 0.125, 0.0
        %v471 = vmul.f32 %v226, %v470
        %v472 = vmul.f32 %v250, %v470
        %v473 = vmul.f32 %v274, %v470
        %v474 = vmul.f32 %v298, %v470
        %v475 = vmul.f32 %v322, %v470
        %v476 = vmul.f32 %v346, %v470
        %v477 = vmul.f32 %v370, %v470
        %v478 = vmul.f32 %v394, %v470
        %v479 = vsel %vm411, %v471, 0.0
        %480 = vadd.xlane.f32.xlu0 %v479
        %v481 = vpop.xlane.xlu0 %480
        %v482 = vsel %vm411, %v472, 0.0
        %483 = vadd.xlane.f32.xlu0 %v482
        %v484 = vpop.xlane.xlu0 %483
        %v485 = vsel %vm411, %v473, 0.0
        %486 = vadd.xlane.f32.xlu0 %v485
        %v487 = vpop.xlane.xlu0 %486
        %v488 = vsel %vm411, %v474, 0.0
        %489 = vadd.xlane.f32.xlu0 %v488
        %v490 = vpop.xlane.xlu0 %489
        %v491 = vsel %vm411, %v475, 0.0
        %492 = vadd.xlane.f32.xlu0 %v491
        %v493 = vpop.xlane.xlu0 %492
        %v494 = vsel %vm411, %v476, 0.0
        %495 = vadd.xlane.f32.xlu0 %v494
        %v496 = vpop.xlane.xlu0 %495
        %v497 = vsel %vm411, %v477, 0.0
        %498 = vadd.xlane.f32.xlu0 %v497
        %v499 = vpop.xlane.xlu0 %498
        %v500 = vsel %vm411, %v478, 0.0
        %501 = vadd.xlane.f32.xlu0 %v500
        %v502 = vpop.xlane.xlu0 %501
        %v511 = vperm.slane %v481, %v400
        %v512 = vperm.slane %v484, %v400
        %v513 = vperm.slane %v487, %v400
        %v514 = vperm.slane %v490, %v400
        %v515 = vperm.slane %v493, %v400
        %v516 = vperm.slane %v496, %v400
        %v517 = vperm.slane %v499, %v400
        %v518 = vperm.slane %v502, %v400
        %v519 = vsel %vm452, %v512, %v511
        %v520 = vsel %vm454, %v513, %v519
        %v521 = vsel %vm456, %v514, %v520
        %v522 = vsel %vm458, %v515, %v521
        %v523 = vsel %vm460, %v516, %v522
        %v524 = vsel %vm462, %v517, %v523
        %v525 = vsel %vm464, %v518, %v524
        %s527 = scalar_lea.vmem %s165, 8 [#allocation2]
        %528 = vst.msk [vmem:[%s527] sm:$0xff] %vm209, %v525
        %v529 = vadd.s32 %v398, 2
        %vm530 = vcmp.eq.s32.totalorder %v400, %v529
        %v531 = vsel %vm530, 0.125, 0.0
        %v532 = vmul.f32 %v226, %v531
        %v533 = vmul.f32 %v250, %v531
        %v534 = vmul.f32 %v274, %v531
        %v535 = vmul.f32 %v298, %v531
        %v536 = vmul.f32 %v322, %v531
        %v537 = vmul.f32 %v346, %v531
        %v538 = vmul.f32 %v370, %v531
        %v539 = vmul.f32 %v394, %v531
        %v540 = vsel %vm411, %v532, 0.0
        %541 = vadd.xlane.f32.xlu0 %v540
        %v542 = vpop.xlane.xlu0 %541
        %v543 = vsel %vm411, %v533, 0.0
        %544 = vadd.xlane.f32.xlu0 %v543
        %v545 = vpop.xlane.xlu0 %544
        %v546 = vsel %vm411, %v534, 0.0
        %547 = vadd.xlane.f32.xlu0 %v546
        %v548 = vpop.xlane.xlu0 %547
        %v549 = vsel %vm411, %v535, 0.0
        %550 = vadd.xlane.f32.xlu0 %v549
        %v551 = vpop.xlane.xlu0 %550
        %v552 = vsel %vm411, %v536, 0.0
        %553 = vadd.xlane.f32.xlu0 %v552
        %v554 = vpop.xlane.xlu0 %553
        %v555 = vsel %vm411, %v537, 0.0
        %556 = vadd.xlane.f32.xlu0 %v555
        %v557 = vpop.xlane.xlu0 %556
        %v558 = vsel %vm411, %v538, 0.0
        %559 = vadd.xlane.f32.xlu0 %v558
        %v560 = vpop.xlane.xlu0 %559
        %v561 = vsel %vm411, %v539, 0.0
        %562 = vadd.xlane.f32.xlu0 %v561
        %v563 = vpop.xlane.xlu0 %562
        %v572 = vperm.slane %v542, %v400
        %v573 = vperm.slane %v545, %v400
        %v574 = vperm.slane %v548, %v400
        %v575 = vperm.slane %v551, %v400
        %v576 = vperm.slane %v554, %v400
        %v577 = vperm.slane %v557, %v400
        %v578 = vperm.slane %v560, %v400
        %v579 = vperm.slane %v563, %v400
        %v580 = vsel %vm452, %v573, %v572
        %v581 = vsel %vm454, %v574, %v580
        %v582 = vsel %vm456, %v575, %v581
        %v583 = vsel %vm458, %v576, %v582
        %v584 = vsel %vm460, %v577, %v583
        %v585 = vsel %vm462, %v578, %v584
        %v586 = vsel %vm464, %v579, %v585
        %s588 = scalar_lea.vmem %s165, 16 [#allocation2]
        %589 = vst.msk [vmem:[%s588] sm:$0xff] %vm209, %v586
        %v590 = vadd.s32 %v398, 3
        %vm591 = vcmp.eq.s32.totalorder %v400, %v590
        %v592 = vsel %vm591, 0.125, 0.0
        %v593 = vmul.f32 %v226, %v592
        %v594 = vmul.f32 %v250, %v592
        %v595 = vmul.f32 %v274, %v592
        %v596 = vmul.f32 %v298, %v592
        %v597 = vmul.f32 %v322, %v592
        %v598 = vmul.f32 %v346, %v592
        %v599 = vmul.f32 %v370, %v592
        %v600 = vmul.f32 %v394, %v592
        %v601 = vsel %vm411, %v593, 0.0
        %602 = vadd.xlane.f32.xlu0 %v601
        %v603 = vpop.xlane.xlu0 %602
        %v604 = vsel %vm411, %v594, 0.0
        %605 = vadd.xlane.f32.xlu0 %v604
        %v606 = vpop.xlane.xlu0 %605
        %v607 = vsel %vm411, %v595, 0.0
        %608 = vadd.xlane.f32.xlu0 %v607
        %v609 = vpop.xlane.xlu0 %608
        %v610 = vsel %vm411, %v596, 0.0
        %611 = vadd.xlane.f32.xlu0 %v610
        %v612 = vpop.xlane.xlu0 %611
        %v613 = vsel %vm411, %v597, 0.0
        %614 = vadd.xlane.f32.xlu0 %v613
        %v615 = vpop.xlane.xlu0 %614
        %v616 = vsel %vm411, %v598, 0.0
        %617 = vadd.xlane.f32.xlu0 %v616
        %v618 = vpop.xlane.xlu0 %617
        %v619 = vsel %vm411, %v599, 0.0
        %620 = vadd.xlane.f32.xlu0 %v619
        %v621 = vpop.xlane.xlu0 %620
        %v622 = vsel %vm411, %v600, 0.0
        %623 = vadd.xlane.f32.xlu0 %v622
        %v624 = vpop.xlane.xlu0 %623
        %v633 = vperm.slane %v603, %v400
        %v634 = vperm.slane %v606, %v400
        %v635 = vperm.slane %v609, %v400
        %v636 = vperm.slane %v612, %v400
        %v637 = vperm.slane %v615, %v400
        %v638 = vperm.slane %v618, %v400
        %v639 = vperm.slane %v621, %v400
        %v640 = vperm.slane %v624, %v400
        %v641 = vsel %vm452, %v634, %v633
        %v642 = vsel %vm454, %v635, %v641
        %v643 = vsel %vm456, %v636, %v642
        %v644 = vsel %vm458, %v637, %v643
        %v645 = vsel %vm460, %v638, %v644
        %v646 = vsel %vm462, %v639, %v645
        %v647 = vsel %vm464, %v640, %v646
        %s649 = scalar_lea.vmem %s165, 24 [#allocation2]
        %650 = vst.msk [vmem:[%s649] sm:$0xff] %vm209, %v647
        %v651 = vadd.s32 %v398, 4
        %vm652 = vcmp.eq.s32.totalorder %v400, %v651
        %v653 = vsel %vm652, 0.125, 0.0
        %v654 = vmul.f32 %v226, %v653
        %v655 = vmul.f32 %v250, %v653
        %v656 = vmul.f32 %v274, %v653
        %v657 = vmul.f32 %v298, %v653
        %v658 = vmul.f32 %v322, %v653
        %v659 = vmul.f32 %v346, %v653
        %v660 = vmul.f32 %v370, %v653
        %v661 = vmul.f32 %v394, %v653
        %v662 = vsel %vm411, %v654, 0.0
        %663 = vadd.xlane.f32.xlu0 %v662
        %v664 = vpop.xlane.xlu0 %663
        %v665 = vsel %vm411, %v655, 0.0
        %666 = vadd.xlane.f32.xlu0 %v665
        %v667 = vpop.xlane.xlu0 %666
        %v668 = vsel %vm411, %v656, 0.0
        %669 = vadd.xlane.f32.xlu0 %v668
        %v670 = vpop.xlane.xlu0 %669
        %v671 = vsel %vm411, %v657, 0.0
        %672 = vadd.xlane.f32.xlu0 %v671
        %v673 = vpop.xlane.xlu0 %672
        %v674 = vsel %vm411, %v658, 0.0
        %675 = vadd.xlane.f32.xlu0 %v674
        %v676 = vpop.xlane.xlu0 %675
        %v677 = vsel %vm411, %v659, 0.0
        %678 = vadd.xlane.f32.xlu0 %v677
        %v679 = vpop.xlane.xlu0 %678
        %v680 = vsel %vm411, %v660, 0.0
        %681 = vadd.xlane.f32.xlu0 %v680
        %v682 = vpop.xlane.xlu0 %681
        %v683 = vsel %vm411, %v661, 0.0
        %684 = vadd.xlane.f32.xlu0 %v683
        %v685 = vpop.xlane.xlu0 %684
        %v694 = vperm.slane %v664, %v400
        %v695 = vperm.slane %v667, %v400
        %v696 = vperm.slane %v670, %v400
        %v697 = vperm.slane %v673, %v400
        %v698 = vperm.slane %v676, %v400
        %v699 = vperm.slane %v679, %v400
        %v700 = vperm.slane %v682, %v400
        %v701 = vperm.slane %v685, %v400
        %v702 = vsel %vm452, %v695, %v694
        %v703 = vsel %vm454, %v696, %v702
        %v704 = vsel %vm456, %v697, %v703
        %v705 = vsel %vm458, %v698, %v704
        %v706 = vsel %vm460, %v699, %v705
        %v707 = vsel %vm462, %v700, %v706
        %v708 = vsel %vm464, %v701, %v707
        %s710 = scalar_lea.vmem %s165, 32 [#allocation2]
        %711 = vst.msk [vmem:[%s710] sm:$0xff] %vm209, %v708
        %s712 = sand.u32 %s90, 1
        %s713 = scalar_lea.sflag [#allocation3], %s712
        %s714 = sand.u32 %s90, 1
        %s715 = smul.addr %s714, 40
        %s716 = scalar_lea.vmem [#allocation2], %s715
        // Predicated region
        $region29: #{tpu_custom_call.1} parent=27 // pred_check
          %p717 = pneg %p100
        $region30: #{tpu_custom_call.1} parent=27 // pred_check_branch
          %719 = sbr.rel (%p717) target = $region32
        $region31: #{tpu_custom_call.1} parent=27 // pred_region
          %721 = vsyncadd %s713, 0
          %s722 = smul.addr %s21, 5
          %s723 = smul.addr %s20, 25
          %s724 = sadd.s32 %s722, %s723
          %s725 = smul.addr %s724, 8
          %s726 = scalar_lea.hbm %s2, %s725
          %s727 = sshll.u32 %s716, 4
          %s728 = int_to_ptr.vmem [resolvable:$true] %s727
          %s729 = sshll.u32 %s726, 4
          %s730 = int_to_ptr.hbm [resolvable:$true] %s729
          %735 = dma.vmem_to_hbm [thread:$0]  %s728, 640, %s730, %s713, 128, 128, 8
        $region32: #{tpu_custom_call.1} parent=27 // pred_fallthru
          _
      $region28: #{tpu_custom_call.1} parent=5 // pred_fallthru
        _
      %p736 = scmp.le.s32.totalorder 2, %s11
      // Predicated region
      $region33: #{tpu_custom_call.1} parent=5 // pred_check
        %p737 = pneg %p736
      $region34: #{tpu_custom_call.1} parent=5 // pred_check_branch
        %739 = sbr.rel (%p737) target = $region36
      $region35: #{tpu_custom_call.1} parent=5 // pred_region
        %s740 = ssub.s32 %s11, 2
        // Predicated region
        $region37: #{tpu_custom_call.1} parent=35 // pred_check
          %p741 = pneg %p106
        $region38: #{tpu_custom_call.1} parent=35 // pred_check_branch
          %743 = sbr.rel (%p741) target = $region40
        $region39: #{tpu_custom_call.1} parent=35 // pred_region
          %s744 = sand.u32 %s91, 1
          %s745 = scalar_lea.sflag [#allocation3], %s744
          %s746 = sand.u32 %s91, 1
          %s747 = smul.addr %s746, 40
          %s748 = scalar_lea.vmem [#allocation2], %s747
          %750 = dma.done %s745, 640
        $region40: #{tpu_custom_call.1} parent=35 // pred_fallthru
          _
      $region36: #{tpu_custom_call.1} parent=5 // pred_fallthru
        _
    $region6: #{tpu_custom_call.1} parent=1 // loop_footer
      %s15 = sadd.s32 1, %s11
    $region7: #{tpu_custom_call.1} parent=1 // loop_footer_branch
      %10 = sbr.rel target = $region3
    $region8: #{tpu_custom_call.1} parent=1 // loop_exit
      _
    %751 = vsyncpa [#allocation3], 1
    %s752 = scalar_lea.sflag [#allocation3], 1
    %753 = vsyncpa %s752, 1

</llo_original>
